<compile_context>
chip_gen: v5e
topology: v5e:2x2
jax: 0.10.0
libtpu: 0.0.40
codegen_flags: <defaults>
</compile_context>

<pallas_src>
import functools

import jax
import jax.numpy as jnp
from jax.experimental import pallas as pl
from jax.experimental.pallas import tpu as pltpu


BN_EPS = 1e-5
H_RAW = 100          # hidden size of the PyTorch module
H_PAD = 128          # hidden padded to a full lane width
OUT_RAW = 2          # number of classes
OUT_PAD = 128        # lane-dense padded logits width (vreg-only; never hits HBM)


def _round_up(x, m):
    return (x + m - 1) // m * m


# ---------------- kernel 1: per-tile batch statistics (sum, sum-of-squares) ----------------
def _stats_kernel(x_ref, w1_ref, b1_ref, o_ref, *, b_true, tile_b):
    bt = pl.program_id(0)
    # Linear 1: (tb, F) @ (F, 128) + (1, 128)
    h = jnp.dot(x_ref[...], w1_ref[...],
                preferred_element_type=jnp.float32) + b1_ref[...]
    if b_true % tile_b != 0:
        # mask batch-tail (partial-block) rows out of the statistics
        row = jax.lax.broadcasted_iota(jnp.int32, (tile_b, 1), 0) + bt * tile_b
        h = jnp.where(row < b_true, h, 0.0)
    s = jnp.sum(h, axis=0, keepdims=True)          # (1, H_PAD)
    ss = jnp.sum(h * h, axis=0, keepdims=True)     # (1, H_PAD)
    o_ref[...] = jnp.concatenate([s, ss], axis=0)[None]   # (1, 2, H_PAD)


# ---------------- kernel 2: fused BN scale/shift + ReLU + Linear2 + log-softmax ------------
def _head_kernel(x_ref, w1_ref, b1_ref, scale_ref, shift_ref, w2_ref, b2_ref, o_ref):
    # Recompute Linear 1 (F is small; cheaper than stashing h to HBM at F=64).
    h = jnp.dot(x_ref[...], w1_ref[...],
                preferred_element_type=jnp.float32) + b1_ref[...]
    # BN folded to one FMA pass, then ReLU.
    hn = jnp.maximum(h * scale_ref[...] + shift_ref[...], 0.0)
    # Linear 2 on the 128-wide padded logits (MXU-friendly); padded columns are zeros.
    logits = jnp.dot(hn, w2_ref[...],
                     preferred_element_type=jnp.float32) + b2_ref[...]   # (tb, OUT_PAD)
    # log-softmax over the 2 real logit lanes only.
    l2 = logits[:, :OUT_RAW]                                             # (tb, 2)
    m = jnp.max(l2, axis=1, keepdims=True)
    z = l2 - m
    lse = jnp.log(jnp.sum(jnp.exp(z), axis=1, keepdims=True))
    o_ref[...] = (z - lse).astype(o_ref.dtype)


def discriminator_forward(x, params, *, tile_b=4096):
    """x: (B, F) float32.  params: weights stored as (in, out).  Returns (B, 2) log-probs."""
    B, F = x.shape
    w1, b1 = params["w1"], params["b1"]              # (F, 100), (100,)
    gamma, beta = params["gamma"], params["beta"]    # (100,),   (100,)
    w2, b2 = params["w2"], params["b2"]              # (100, 2), (2,)

    # ---- pad hidden 100 -> 128 (zeros) and logits 2 -> 128 (zeros; vreg-only) ----
    w1p = jnp.zeros((F, H_PAD), jnp.float32).at[:, :H_RAW].set(w1)
    b1p = jnp.zeros((1, H_PAD), jnp.float32).at[:, :H_RAW].set(b1.reshape(1, -1))
    gp = jnp.zeros((1, H_PAD), jnp.float32).at[:, :H_RAW].set(gamma.reshape(1, -1))
    bp = jnp.zeros((1, H_PAD), jnp.float32).at[:, :H_RAW].set(beta.reshape(1, -1))
    w2p = jnp.zeros((H_PAD, OUT_PAD), jnp.float32).at[:H_RAW, :OUT_RAW].set(w2)
    b2p = jnp.zeros((1, OUT_PAD), jnp.float32).at[:, :OUT_RAW].set(b2.reshape(1, -1))

    # ---- batch tiling: big tiles to amortize per-step overhead, capped for v5e VMEM ----
    vmem_budget = 12 * 1024 * 1024                       # headroom under v5e's 16 MiB scoped VMEM
    bytes_per_row = 2 * F * 4 + 2 * OUT_RAW * 4          # double-buffered x tile + out tile (f32)
    cap = max(512, (vmem_budget // bytes_per_row) // 8 * 8)
    tb = min(tile_b, cap, _round_up(B, 8))               # multiple of 8 (sublane)
    nb = pl.cdiv(B, tb)                                   # partial last block handled by Pallas

    const2 = lambda shape: pl.BlockSpec(shape, lambda bt: (0, 0))   # resident weights

    # ---------------- pass 1: per-tile partial batch statistics ----------------
    stats_kernel = functools.partial(_stats_kernel, b_true=B, tile_b=tb)
    partials = pl.pallas_call(
        stats_kernel,
        out_shape=jax.ShapeDtypeStruct((nb, 2, H_PAD), jnp.float32),
        grid_spec=pltpu.PrefetchScalarGridSpec(
            num_scalar_prefetch=0,
            grid=(nb,),
            in_specs=[
                pl.BlockSpec((tb, F), lambda bt: (bt, 0)),   # x tile
                const2((F, H_PAD)),                          # w1
                const2((1, H_PAD)),                          # b1
            ],
            out_specs=pl.BlockSpec((1, 2, H_PAD), lambda bt: (bt, 0, 0)),
        ),
        compiler_params=pltpu.CompilerParams(
            dimension_semantics=("parallel",),               # shardable across v7x TCs
        ),
    )(x, w1p, b1p)

    # tiny XLA reduce (nb x 2 x 128) + fold BatchNorm into one scale/shift
    totals = jnp.sum(partials, axis=0)                       # (2, H_PAD)
    inv_n = jnp.float32(1.0 / B)
    mean = totals[0:1] * inv_n                                # (1, H_PAD)
    var = jnp.maximum(totals[1:2] * inv_n - mean * mean, 0.0)
    scale = gp * jax.lax.rsqrt(var + BN_EPS)                  # padded lanes -> 0
    shift = bp - mean * scale

    # ---------------- pass 2: normalize + head, narrow (B, 2) HBM output ----------------
    out = pl.pallas_call(
        _head_kernel,
        out_shape=jax.ShapeDtypeStruct((B, OUT_RAW), jnp.float32),
        grid_spec=pltpu.PrefetchScalarGridSpec(
            num_scalar_prefetch=0,
            grid=(nb,),
            in_specs=[
                pl.BlockSpec((tb, F), lambda bt: (bt, 0)),   # x tile
                const2((F, H_PAD)),                          # w1
                const2((1, H_PAD)),                          # b1
                const2((1, H_PAD)),                          # scale
                const2((1, H_PAD)),                          # shift
                const2((H_PAD, OUT_PAD)),                    # w2
                const2((1, OUT_PAD)),                        # b2
            ],
            out_specs=pl.BlockSpec((tb, OUT_RAW), lambda bt: (bt, 0)),
        ),
        compiler_params=pltpu.CompilerParams(
            dimension_semantics=("parallel",),
        ),
    )(x, w1p, b1p, scale, shift, w2p, b2p)

    return out


def init_params(key, in_features, hidden=H_RAW, out_features=OUT_RAW):
    """Deterministic synthetic init; shapes match the PyTorch module (weights stored as (in, out))."""
    k1, k2, k3, k4 = jax.random.split(key, 4)
    s1 = 1.0 / jnp.sqrt(in_features)
    s2 = 1.0 / jnp.sqrt(hidden)
    return {
        "w1": jax.random.uniform(k1, (in_features, hidden), jnp.float32, -s1, s1),
        "b1": jax.random.uniform(k2, (hidden,), jnp.float32, -s1, s1),
        "gamma": jnp.ones((hidden,), jnp.float32),    # BatchNorm1d weight init
        "beta": jnp.zeros((hidden,), jnp.float32),    # BatchNorm1d bias init
        "w2": jax.random.uniform(k3, (hidden, out_features), jnp.float32, -s2, s2),
        "b2": jax.random.uniform(k4, (out_features,), jnp.float32, -s2, s2),
    }


def reference_forward(x, p):
    """Pure-JAX reference (PyTorch forward right after init: BN in training mode)."""
    h = x @ p["w1"] + p["b1"]
    mean = jnp.mean(h, axis=0, keepdims=True)
    var = jnp.mean((h - mean) ** 2, axis=0, keepdims=True)   # biased variance
    h = (h - mean) / jnp.sqrt(var + BN_EPS)
    h = h * p["gamma"] + p["beta"]
    h = jnp.maximum(h, 0.0)
    logits = h @ p["w2"] + p["b2"]
    return jax.nn.log_softmax(logits, axis=1)


if __name__ == "__main__":
    # configs.output_channels = 4, configs.feature_length = 16 -> in_features = 64
    batch, out_channels, feat_len = 8, 4, 16
    in_features = out_channels * feat_len

    key = jax.random.PRNGKey(0)
    kx, kp = jax.random.split(key)
    x = jax.random.normal(kx, (batch, in_features), jnp.float32)
    params = init_params(kp, in_features)

    out = discriminator_forward(x, params)
    out = jax.block_until_ready(out)

    ref = reference_forward(x, params)
    assert out.shape == (batch, 2)
    assert jnp.allclose(out, ref, atol=5e-4, rtol=5e-4), "mismatch vs reference"

    print("KERNEL_OK")
</pallas_src>

<mosaic_0001>
module attributes {stable_mosaic.version = 11 : i64} {
  func.func @_stats_kernel(%arg0: i32, %arg1: memref<8x64xf32, #tpu.memory_space<vmem>>, %arg2: memref<64x128xf32, #tpu.memory_space<vmem>>, %arg3: memref<1x128xf32, #tpu.memory_space<vmem>>, %arg4: memref<1x2x128xf32, #tpu.memory_space<vmem>>) attributes {dimension_semantics = [#tpu.dimension_semantics<parallel>], iteration_bounds = array<i64: 1>, scalar_prefetch = 0 : i64, scratch_operands = 0 : i64, tpu.core_type = #tpu.core_type<tc>, window_params = [{transform_indices = @transform_0, window_bounds = array<i64: 8, 64>}, {pipeline_mode = #tpu.pipeline_mode<synchronous>, transform_indices = @transform_1, window_bounds = array<i64: 64, 128>}, {pipeline_mode = #tpu.pipeline_mode<synchronous>, transform_indices = @transform_2, window_bounds = array<i64: 1, 128>}, {transform_indices = @transform_3, window_bounds = array<i64: 1, 2, 128>}]} {
    %c0 = arith.constant 0 : index
    %c0_0 = arith.constant 0 : index
    %0 = vector.load %arg1[%c0, %c0_0] : memref<8x64xf32, #tpu.memory_space<vmem>>, vector<8x64xf32>
    %c0_1 = arith.constant 0 : index
    %c0_2 = arith.constant 0 : index
    %1 = vector.load %arg2[%c0_1, %c0_2] : memref<64x128xf32, #tpu.memory_space<vmem>>, vector<64x128xf32>
    %cst = arith.constant dense<0.000000e+00> : vector<8x128xf32>
    %2 = tpu.matmul %0, %1, %cst {dimension_numbers = #tpu.dot_dimension_numbers<[1], [0], [0], [1], [0, 0, 1, 1], [], []>} : vector<8x64xf32>, vector<64x128xf32>, vector<8x128xf32> -> vector<8x128xf32>
    %c0_3 = arith.constant 0 : index
    %c0_4 = arith.constant 0 : index
    %3 = vector.load %arg3[%c0_3, %c0_4] : memref<1x128xf32, #tpu.memory_space<vmem>>, vector<1x128xf32>
    %4 = vector.broadcast %3 : vector<1x128xf32> to vector<8x128xf32>
    %5 = arith.addf %2, %4 : vector<8x128xf32>
    %cst_5 = arith.constant dense<0.000000e+00> : vector<128xf32>
    %6 = vector.multi_reduction <add>, %5, %cst_5 [0] : vector<8x128xf32> to vector<128xf32>
    %7 = vector.shape_cast %6 : vector<128xf32> to vector<1x128xf32>
    %8 = arith.mulf %5, %5 : vector<8x128xf32>
    %cst_6 = arith.constant dense<0.000000e+00> : vector<128xf32>
    %9 = vector.multi_reduction <add>, %8, %cst_6 [0] : vector<8x128xf32> to vector<128xf32>
    %10 = vector.shape_cast %9 : vector<128xf32> to vector<1x128xf32>
    %11 = tpu.concatenate %7, %10 in 0 : vector<1x128xf32>, vector<1x128xf32> -> vector<2x128xf32>
    %12 = vector.shape_cast %11 : vector<2x128xf32> to vector<1x2x128xf32>
    %c0_7 = arith.constant 0 : index
    %c0_8 = arith.constant 0 : index
    %c0_9 = arith.constant 0 : index
    %13 = vector.load %arg4[%c0_7, %c0_8, %c0_9] : memref<1x2x128xf32, #tpu.memory_space<vmem>>, vector<1x2x128xf32>
    tpu.vector_store %arg4[%c0_7, %c0_8, %c0_9], %12 {strides = array<i32>} : memref<1x2x128xf32, #tpu.memory_space<vmem>>, vector<1x2x128xf32>,
    return
  }
  func.func @transform_0(%arg0: i32) -> (i32, i32) {
    %c0_i32 = arith.constant 0 : i32
    %c0_i32_0 = arith.constant 0 : i32
    return %arg0, %c0_i32 : i32, i32
  }
  func.func @transform_1(%arg0: i32) -> (i32, i32) {
    %c0_i32 = arith.constant 0 : i32
    %c0_i32_0 = arith.constant 0 : i32
    %c0_i32_1 = arith.constant 0 : i32
    return %c0_i32, %c0_i32_0 : i32, i32
  }
  func.func @transform_2(%arg0: i32) -> (i32, i32) {
    %c0_i32 = arith.constant 0 : i32
    %c0_i32_0 = arith.constant 0 : i32
    %c0_i32_1 = arith.constant 0 : i32
    return %c0_i32, %c0_i32_0 : i32, i32
  }
  func.func @transform_3(%arg0: i32) -> (i32, i32, i32) {
    %c0_i32 = arith.constant 0 : i32
    %c0_i32_0 = arith.constant 0 : i32
    %c0_i32_1 = arith.constant 0 : i32
    return %arg0, %c0_i32, %c0_i32_0 : i32, i32, i32
  }
}

</mosaic_0001>

<llo_original>
// kernel: tpu_custom_call.1
$region0: #{tpu_custom_call.1}
  #allocation0 [shape = 'u32[]', space=smem, size = 0x4, offset = 0x4, fixed_abs, tag = 'smem constant byte address 0x4 - core index']
  #allocation1 [shape = 'u32[72,128]{1,0:T(1,128)}', space=vmem, size = 0x9000, scoped, tag = 'internal scratch']
  %s0 = inlined_call_operand.hbm [shape: f32[8,64], index: 0, kind: input, shape index: {}]
  %s1 = inlined_call_operand.hbm [shape: f32[64,128], index: 1, kind: input, shape index: {}]
  %s2 = inlined_call_operand.vmem [shape: f32[1,128], index: 2, kind: input, shape index: {}]
  %s3 = inlined_call_operand.hbm [shape: f32[1,2,128], index: 3, kind: output, shape index: {}]
  %s4 = sld [smem:[#allocation0]]
  $region30: #{tpu_custom_call.1} parent=0
    _
  %s6 = ssub.s32 1, %s4
  %s7 = scalar_select 0, %s6, %s4
  $region1: #{tpu_custom_call.1} parent=0
    #allocation2 [shape = 'u8[4096]{0}', space=vmem, size = 0x1000, scoped, tag = 'input window, operand 0, single buffered']
    #allocation3 [shape = 's32[1]{0}', space=sflag, size = 0x4, scoped, tag = 'scoped memory for tpu_custom_call.1']
    #allocation4 [shape = 's32[1]{0}', space=sflag, size = 0x4, scoped, tag = 'scoped memory for tpu_custom_call.1']
    #allocation5 [shape = 'u8[32768]{0}', space=vmem, size = 0x8000, scoped, tag = 'input window, operand 1, single buffered']
    #allocation6 [shape = 's32[1]{0}', space=sflag, size = 0x4, scoped, tag = 'scoped memory for tpu_custom_call.1']
    #allocation7 [shape = 'u8[1024]{0}', space=vmem, size = 0x400, scoped, tag = 'output window, operand 0, single buffered']
    %8 = vsyncpa [#allocation3], 0
    %9 = vsyncpa [#allocation6], 0
    %10 = vsyncpa [#allocation4], 0
    // Predicated region
    $region2: #{tpu_custom_call.1} parent=1 // pred_check
      _
    $region3: #{tpu_custom_call.1} parent=1 // pred_check_branch
      %12 = sbr.rel (0) target = $region5
    $region4: #{tpu_custom_call.1} parent=1 // pred_region
      %14 = vsyncadd [#allocation3], 0
      %s16 = sshll.u32 %s0, 4
      %s17 = int_to_ptr.hbm [resolvable:$true] %s16
      %s18 = sshll.u32 [#allocation2], 4
      %s19 = int_to_ptr.vmem [resolvable:$true] %s18
      %21 = dma.hbm_to_vmem [thread:$0]  %s17, 128, %s19, [#allocation3]
    $region5: #{tpu_custom_call.1} parent=1 // pred_fallthru
      _
    // Predicated region
    $region6: #{tpu_custom_call.1} parent=1 // pred_check
      _
    $region7: #{tpu_custom_call.1} parent=1 // pred_check_branch
      %23 = sbr.rel (0) target = $region9
    $region8: #{tpu_custom_call.1} parent=1 // pred_region
      %25 = vsyncadd [#allocation6], 0
      %s26 = sshll.u32 %s1, 4
      %s27 = int_to_ptr.hbm [resolvable:$true] %s26
      %s28 = sshll.u32 [#allocation5], 4
      %s29 = int_to_ptr.vmem [resolvable:$true] %s28
      %34 = dma.hbm_to_vmem [thread:$0]  %s27, 1024, %s29, [#allocation6], 128, 128, 8
    $region9: #{tpu_custom_call.1} parent=1 // pred_fallthru
      _
    // Predicated region
    $region10: #{tpu_custom_call.1} parent=1 // pred_check
      _
    $region11: #{tpu_custom_call.1} parent=1 // pred_check_branch
      %36 = sbr.rel (0) target = $region13
    $region12: #{tpu_custom_call.1} parent=1 // pred_region
      _
    $region13: #{tpu_custom_call.1} parent=1 // pred_fallthru
      _
    // Predicated region
    $region14: #{tpu_custom_call.1} parent=1 // pred_check
      _
    $region15: #{tpu_custom_call.1} parent=1 // pred_check_branch
      %38 = sbr.rel (0) target = $region17
    $region16: #{tpu_custom_call.1} parent=1 // pred_region
      %40 = dma.done [#allocation3], 128
    $region17: #{tpu_custom_call.1} parent=1 // pred_fallthru
      _
    // Predicated region
    $region18: #{tpu_custom_call.1} parent=1 // pred_check
      _
    $region19: #{tpu_custom_call.1} parent=1 // pred_check_branch
      %42 = sbr.rel (0) target = $region21
    $region20: #{tpu_custom_call.1} parent=1 // pred_region
      %44 = dma.done [#allocation6], 1024
    $region21: #{tpu_custom_call.1} parent=1 // pred_fallthru
      _
    %v45 = vld [vmem:[#allocation2] sm:$0xff]
    %v46 = vld [vmem:[#allocation5] sm:$0xff]
    %v47 = vld [vmem:[#allocation5 + $0x8] sm:$0xff]
    %v48 = vld [vmem:[#allocation5 + $0x10] sm:$0xff]
    %v49 = vld [vmem:[#allocation5 + $0x18] sm:$0xff]
    %v50 = vld [vmem:[#allocation5 + $0x20] sm:$0xff]
    %v51 = vld [vmem:[#allocation5 + $0x28] sm:$0xff]
    %v52 = vld [vmem:[#allocation5 + $0x30] sm:$0xff]
    %v53 = vld [vmem:[#allocation5 + $0x38] sm:$0xff]
    %v54 = vld [vmem:[%s2] sm:$0x1]
    %v56 = vperm.slane %v54, 0
    %vm58 = vcmask 523264
    %v60 = vsel %vm58, %v45, 0
    %62 = vmatpush.msra.mxu0 0.0
    %63 = vmatpush.msra.mxu0 0.0
    %64 = vmatpush.msra.mxu0 0.0
    %65 = vmatpush.msra.mxu0 0.0
    %66 = vmatpush.msra.mxu0 0.0
    %67 = vmatpush.msra.mxu0 0.0
    %68 = vmatpush.msra.mxu0 0.0
    %69 = vmatpush.msra.mxu0 0.0
    %70 = vmatpush.msra.mxu0 %v53
    %71 = vmatpush.msra.mxu0 %v52
    %72 = vmatpush.msra.mxu0 %v51
    %73 = vmatpush.msra.mxu0 %v50
    %74 = vmatpush.msra.mxu0 %v49
    %75 = vmatpush.msra.mxu0 %v48
    %76 = vmatpush.msra.mxu0 %v47
    %77 = vmatpush.msra.mxu0 %v46
    %78 = vmatmul.f32.gmra.mxu0 %v60
    %v79 = vpop.f32.mrf.mxu0
    %v80 = vadd.f32 %v56, %v79
    %81 = vdwg.mxu0
    %v82 = vrot.slane %v80, 4
    %v83 = vadd.f32 %v80, %v82
    %v84 = vrot.slane %v83, 2
    %v85 = vadd.f32 %v83, %v84
    %v86 = vrot.slane %v85, 1
    %v87 = vadd.f32 %v85, %v86
    %v88 = vmul.f32 %v80, %v80
    %v89 = vrot.slane %v88, 4
    %v90 = vadd.f32 %v88, %v89
    %v91 = vrot.slane %v90, 2
    %v92 = vadd.f32 %v90, %v91
    %v93 = vrot.slane %v92, 1
    %v94 = vadd.f32 %v92, %v93
    %vm95 = vcmask 1040384
    %v96 = vsel %vm95, %v87, %v94
    %97 = vst [vmem:[#allocation7] sm:$0x3] %v96
    // Predicated region
    $region22: #{tpu_custom_call.1} parent=1 // pred_check
      _
    $region23: #{tpu_custom_call.1} parent=1 // pred_check_branch
      %99 = sbr.rel (0) target = $region25
    $region24: #{tpu_custom_call.1} parent=1 // pred_region
      %101 = vsyncadd [#allocation4], 0
      %s103 = sshll.u32 [#allocation7], 4
      %s104 = int_to_ptr.vmem [resolvable:$true] %s103
      %s105 = sshll.u32 %s3, 4
      %s106 = int_to_ptr.hbm [resolvable:$true] %s105
      %108 = dma.vmem_to_hbm [thread:$0]  %s104, 32, %s106, [#allocation4]
    $region25: #{tpu_custom_call.1} parent=1 // pred_fallthru
      _
    // Predicated region
    $region26: #{tpu_custom_call.1} parent=1 // pred_check
      _
    $region27: #{tpu_custom_call.1} parent=1 // pred_check_branch
      %110 = sbr.rel (0) target = $region29
    $region28: #{tpu_custom_call.1} parent=1 // pred_region
      %112 = dma.done [#allocation4], 32
    $region29: #{tpu_custom_call.1} parent=1 // pred_fallthru
      _
    %113 = vsyncpa [#allocation3], 1
    %114 = vsyncpa [#allocation6], 1
    %115 = vsyncpa [#allocation4], 1

</llo_original>
